<compile_context>
chip_gen: v6e
topology: v6e:2x2x1
jax: 0.10.0
libtpu: 0.0.40
codegen_flags: <defaults>
</compile_context>

<pallas_src>
import functools

import numpy as np
import jax
import jax.numpy as jnp
from jax.experimental import pallas as pl
from jax.experimental.pallas import tpu as pltpu


# ----------------------------------------------------------------------------
# small helpers
# ----------------------------------------------------------------------------
def _tile(dim, pref):
    """Pick a tile size: full dim if small, else `pref` (must divide)."""
    if dim <= pref:
        return dim
    assert dim % pref == 0, (dim, pref)
    return pref


def _rope(x, cos, sin, d):
    """HF-style rotate_half RoPE on a (rows, d) f32 tile."""
    x1 = x[..., : d // 2]
    x2 = x[..., d // 2:]
    rot = jnp.concatenate([-x2, x1], axis=-1)
    return x * cos + rot * sin


# ----------------------------------------------------------------------------
# Pallas kernels
# ----------------------------------------------------------------------------
def _matmul_kernel(x_ref, w_ref, o_ref, acc_ref):
    @pl.when(pl.program_id(2) == 0)
    def _():
        acc_ref[...] = jnp.zeros_like(acc_ref)

    acc_ref[...] += jnp.dot(x_ref[...], w_ref[...],
                            preferred_element_type=jnp.float32)

    @pl.when(pl.program_id(2) == pl.num_programs(2) - 1)
    def _():
        o_ref[...] = acc_ref[...].astype(o_ref.dtype)


def _matmul_bias_kernel(x_ref, w_ref, b_ref, o_ref, acc_ref):
    @pl.when(pl.program_id(2) == 0)
    def _():
        acc_ref[...] = jnp.zeros_like(acc_ref)

    acc_ref[...] += jnp.dot(x_ref[...], w_ref[...],
                            preferred_element_type=jnp.float32)

    @pl.when(pl.program_id(2) == pl.num_programs(2) - 1)
    def _():
        y = acc_ref[...] + b_ref[...].astype(jnp.float32)
        o_ref[...] = y.astype(o_ref.dtype)


def _gate_up_silu_kernel(x_ref, wg_ref, wu_ref, o_ref, accg_ref, accu_ref):
    @pl.when(pl.program_id(2) == 0)
    def _():
        accg_ref[...] = jnp.zeros_like(accg_ref)
        accu_ref[...] = jnp.zeros_like(accu_ref)

    x = x_ref[...]
    accg_ref[...] += jnp.dot(x, wg_ref[...], preferred_element_type=jnp.float32)
    accu_ref[...] += jnp.dot(x, wu_ref[...], preferred_element_type=jnp.float32)

    @pl.when(pl.program_id(2) == pl.num_programs(2) - 1)
    def _():
        g = accg_ref[...]
        o_ref[...] = (g * jax.lax.logistic(g) * accu_ref[...]).astype(o_ref.dtype)


def _rmsnorm_kernel(x_ref, w_ref, o_ref, *, eps):
    x = x_ref[...].astype(jnp.float32)
    var = jnp.mean(x * x, axis=-1, keepdims=True)
    y = x * jax.lax.rsqrt(var + eps) * w_ref[...].astype(jnp.float32)
    o_ref[...] = y.astype(o_ref.dtype)


def _add_rmsnorm_kernel(x_ref, r_ref, w_ref, o_ref, res_ref, *, eps):
    s = x_ref[...].astype(jnp.float32) + r_ref[...].astype(jnp.float32)
    res_ref[...] = s.astype(res_ref.dtype)
    var = jnp.mean(s * s, axis=-1, keepdims=True)
    y = s * jax.lax.rsqrt(var + eps) * w_ref[...].astype(jnp.float32)
    o_ref[...] = y.astype(o_ref.dtype)


def _flash_attn_kernel(q_ref, k_ref, v_ref, cosq_ref, sinq_ref, cosk_ref, sink_ref,
                       o_ref, q_sc, m_sc, l_sc, acc_sc, *, scale, tq, tk, d):
    qi = pl.program_id(1)
    ki = pl.program_id(2)

    @pl.when(ki == 0)
    def _():
        q = q_ref[0].astype(jnp.float32)
        q_sc[...] = _rope(q, cosq_ref[...], sinq_ref[...], d) * scale
        m_sc[...] = jnp.full_like(m_sc, -1e30)
        l_sc[...] = jnp.zeros_like(l_sc)
        acc_sc[...] = jnp.zeros_like(acc_sc)

    # Skip kv tiles that lie entirely in the causal future of this q tile.
    @pl.when(ki * tk < (qi + 1) * tq)
    def _():
        k = _rope(k_ref[0].astype(jnp.float32), cosk_ref[...], sink_ref[...], d)
        s = jnp.dot(q_sc[...].astype(jnp.bfloat16),
                    k.astype(jnp.bfloat16).T,
                    preferred_element_type=jnp.float32)              # (tq, tk)
        qpos = qi * tq + jax.lax.broadcasted_iota(jnp.int32, (tq, tk), 0)
        kpos = ki * tk + jax.lax.broadcasted_iota(jnp.int32, (tq, tk), 1)
        s = jnp.where(kpos <= qpos, s, -1e30)

        m_prev = m_sc[...]
        m_new = jnp.maximum(m_prev, jnp.max(s, axis=-1, keepdims=True))
        alpha = jnp.exp(m_prev - m_new)
        p = jnp.exp(s - m_new)
        l_sc[...] = alpha * l_sc[...] + jnp.sum(p, axis=-1, keepdims=True)
        acc_sc[...] = alpha * acc_sc[...] + jnp.dot(
            p.astype(jnp.bfloat16), v_ref[0],
            preferred_element_type=jnp.float32)
        m_sc[...] = m_new

    @pl.when(ki == pl.num_programs(2) - 1)
    def _():
        o = acc_sc[...] * pl.reciprocal(l_sc[...], approx=True)
        o_ref[0] = o.astype(o_ref.dtype)


# ----------------------------------------------------------------------------
# pallas_call wrappers
# ----------------------------------------------------------------------------
_DIMSEM3 = pltpu.CompilerParams(
    dimension_semantics=("parallel", "parallel", "arbitrary"))
_DIMSEM1 = pltpu.CompilerParams(dimension_semantics=("parallel",))


def matmul(x, w, b=None, *, tm_pref=128, tn_pref=256, tk_pref=256):
    """x:(M,K) bf16 @ w:(K,N) bf16 [+ b:(N,) f32] -> (M,N) bf16. Tiled, f32 acc."""
    M, K = x.shape
    N = w.shape[1]
    tm, tn, tk = _tile(M, tm_pref), _tile(N, tn_pref), _tile(K, tk_pref)
    grid = (M // tm, N // tn, K // tk)

    x_spec = pl.BlockSpec((tm, tk), lambda i, j, k: (i, k))
    w_spec = pl.BlockSpec((tk, tn), lambda i, j, k: (k, j))
    o_spec = pl.BlockSpec((tm, tn), lambda i, j, k: (i, j))
    scratch = [pltpu.VMEM((tm, tn), jnp.float32)]

    if b is None:
        return pl.pallas_call(
            _matmul_kernel,
            grid=grid,
            in_specs=[x_spec, w_spec],
            out_specs=o_spec,
            out_shape=jax.ShapeDtypeStruct((M, N), x.dtype),
            scratch_shapes=scratch,
            compiler_params=_DIMSEM3,
        )(x, w)

    b2 = b.reshape(1, N)
    b_spec = pl.BlockSpec((1, tn), lambda i, j, k: (0, j))
    return pl.pallas_call(
        _matmul_bias_kernel,
        grid=grid,
        in_specs=[x_spec, w_spec, b_spec],
        out_specs=o_spec,
        out_shape=jax.ShapeDtypeStruct((M, N), x.dtype),
        scratch_shapes=scratch,
        compiler_params=_DIMSEM3,
    )(x, w, b2)


def gate_up_silu(x, wg, wu, *, tm_pref=128, tn_pref=256, tk_pref=256):
    """Fused (x @ Wg, x @ Wu) with SiLU(gate) * up epilogue. bf16 in/out, f32 acc."""
    M, K = x.shape
    N = wg.shape[1]
    tm, tn, tk = _tile(M, tm_pref), _tile(N, tn_pref), _tile(K, tk_pref)
    grid = (M // tm, N // tn, K // tk)
    return pl.pallas_call(
        _gate_up_silu_kernel,
        grid=grid,
        in_specs=[
            pl.BlockSpec((tm, tk), lambda i, j, k: (i, k)),
            pl.BlockSpec((tk, tn), lambda i, j, k: (k, j)),
            pl.BlockSpec((tk, tn), lambda i, j, k: (k, j)),
        ],
        out_specs=pl.BlockSpec((tm, tn), lambda i, j, k: (i, j)),
        out_shape=jax.ShapeDtypeStruct((M, N), x.dtype),
        scratch_shapes=[pltpu.VMEM((tm, tn), jnp.float32),
                        pltpu.VMEM((tm, tn), jnp.float32)],
        compiler_params=_DIMSEM3,
    )(x, wg, wu)


def rmsnorm(x, w, eps, *, tm_pref=256):
    M, E = x.shape
    tm = _tile(M, tm_pref)
    return pl.pallas_call(
        functools.partial(_rmsnorm_kernel, eps=eps),
        grid=(M // tm,),
        in_specs=[pl.BlockSpec((tm, E), lambda i: (i, 0)),
                  pl.BlockSpec((1, E), lambda i: (0, 0))],
        out_specs=pl.BlockSpec((tm, E), lambda i: (i, 0)),
        out_shape=jax.ShapeDtypeStruct((M, E), x.dtype),
        compiler_params=_DIMSEM1,
    )(x, w.reshape(1, E))


def add_rmsnorm(x, residual, w, eps, *, tm_pref=256):
    """out = rmsnorm(x + residual); new_residual = x + residual (updated in place)."""
    M, E = x.shape
    tm = _tile(M, tm_pref)
    out, new_res = pl.pallas_call(
        functools.partial(_add_rmsnorm_kernel, eps=eps),
        grid=(M // tm,),
        in_specs=[pl.BlockSpec((tm, E), lambda i: (i, 0)),
                  pl.BlockSpec((tm, E), lambda i: (i, 0)),
                  pl.BlockSpec((1, E), lambda i: (0, 0))],
        out_specs=(pl.BlockSpec((tm, E), lambda i: (i, 0)),
                   pl.BlockSpec((tm, E), lambda i: (i, 0))),
        out_shape=(jax.ShapeDtypeStruct((M, E), x.dtype),
                   jax.ShapeDtypeStruct((M, E), x.dtype)),
        input_output_aliases={1: 1},   # residual stream updated in place
        compiler_params=_DIMSEM1,
    )(x, residual, w.reshape(1, E))
    return out, new_res


def flash_attention(q, k, v, cos, sin, *, scale, tq_pref=128, tk_pref=128):
    """Causal GQA flash attention with RoPE fused into the q/k tile prologue.

    q: (Hq, S, D) bf16; k, v: (Hkv, S, D) bf16; cos/sin: (S, D) f32."""
    Hq, S, D = q.shape
    Hkv = k.shape[0]
    group = Hq // Hkv
    tq, tk = _tile(S, tq_pref), _tile(S, tk_pref)
    grid = (Hq, S // tq, S // tk)

    kernel = functools.partial(_flash_attn_kernel, scale=scale, tq=tq, tk=tk, d=D)
    return pl.pallas_call(
        kernel,
        grid=grid,
        in_specs=[
            pl.BlockSpec((1, tq, D), lambda h, qi, ki: (h, qi, 0)),
            pl.BlockSpec((1, tk, D), lambda h, qi, ki: (h // group, ki, 0)),
            pl.BlockSpec((1, tk, D), lambda h, qi, ki: (h // group, ki, 0)),
            pl.BlockSpec((tq, D), lambda h, qi, ki: (qi, 0)),
            pl.BlockSpec((tq, D), lambda h, qi, ki: (qi, 0)),
            pl.BlockSpec((tk, D), lambda h, qi, ki: (ki, 0)),
            pl.BlockSpec((tk, D), lambda h, qi, ki: (ki, 0)),
        ],
        out_specs=pl.BlockSpec((1, tq, D), lambda h, qi, ki: (h, qi, 0)),
        out_shape=jax.ShapeDtypeStruct((Hq, S, D), q.dtype),
        scratch_shapes=[
            pltpu.VMEM((tq, D), jnp.float32),   # roped + scaled q
            pltpu.VMEM((tq, 1), jnp.float32),   # m (running max)
            pltpu.VMEM((tq, 1), jnp.float32),   # l (running denom)
            pltpu.VMEM((tq, D), jnp.float32),   # acc
        ],
        compiler_params=_DIMSEM3,
    )(q, k, v, cos, sin, cos, sin)


# ----------------------------------------------------------------------------
# rotary embedding glue (mirrors rotary_emb + _apply_mrope_selection)
# ----------------------------------------------------------------------------
def compute_mrope_cos_sin(mrope_position_ids, mrope_section, head_dim, rope_theta,
                          seq_len):
    inv_freq = 1.0 / (rope_theta ** (np.arange(0, head_dim, 2, dtype=np.float32)
                                     / head_dim))                       # (D/2,)
    pos = np.zeros((3, seq_len), np.float32)
    m = np.asarray(mrope_position_ids, np.float32)
    pos[:, :m.shape[-1]] = m
    freqs = pos[:, :, None] * inv_freq[None, None, :]                   # (3, S, D/2)
    emb = np.concatenate([freqs, freqs], axis=-1)                       # (3, S, D)
    cos3, sin3 = np.cos(emb), np.sin(emb)

    sections = list(mrope_section) * 2
    cos = np.zeros((seq_len, head_dim), np.float32)
    sin = np.zeros_like(cos)
    start = 0
    for i, sz in enumerate(sections):
        cos[:, start:start + sz] = cos3[i % 3, :, start:start + sz]
        sin[:, start:start + sz] = sin3[i % 3, :, start:start + sz]
        start += sz
    return jnp.asarray(cos), jnp.asarray(sin)


def compute_rope_cos_sin(position_ids, head_dim, rope_theta):
    inv_freq = 1.0 / (rope_theta ** (np.arange(0, head_dim, 2, dtype=np.float32)
                                     / head_dim))
    freqs = np.asarray(position_ids, np.float32)[:, None] * inv_freq[None, :]
    emb = np.concatenate([freqs, freqs], axis=-1)
    return jnp.asarray(np.cos(emb)), jnp.asarray(np.sin(emb))


# ----------------------------------------------------------------------------
# model forward (mirrors Qwen2Model.forward, prefill path)
# ----------------------------------------------------------------------------
def decoder_layer_forward(h, residual, cos, sin, p, cfg):
    S = h.shape[0]
    Hq = cfg["num_attention_heads"]
    Hkv = cfg["num_key_value_heads"]
    D = cfg["head_dim"]
    eps = cfg["rms_norm_eps"]

    if residual is None:
        residual = h
        h = rmsnorm(h, p["input_norm_w"], eps)
    else:
        h, residual = add_rmsnorm(h, residual, p["input_norm_w"], eps)

    # attention
    qkv = matmul(h, p["qkv_w"], p["qkv_b"])                      # (S, (Hq+2Hkv)*D)
    q = qkv[:, : Hq * D].reshape(S, Hq, D).transpose(1, 0, 2)    # (Hq, S, D)
    k = qkv[:, Hq * D:(Hq + Hkv) * D].reshape(S, Hkv, D).transpose(1, 0, 2)
    v = qkv[:, (Hq + Hkv) * D:].reshape(S, Hkv, D).transpose(1, 0, 2)
    o = flash_attention(q, k, v, cos, sin, scale=D ** -0.5)      # (Hq, S, D)
    o = o.transpose(1, 0, 2).reshape(S, Hq * D)
    h = matmul(o, p["o_w"])                                      # no bias

    # post-attention norm + MLP
    h, residual = add_rmsnorm(h, residual, p["post_norm_w"], eps)
    h = gate_up_silu(h, p["gate_w"], p["up_w"])
    h = matmul(h, p["down_w"])                                   # no bias
    return h, residual


def qwen2_model_forward(input_ids, mrope_position_ids, params, cfg):
    S = int(input_ids.shape[0])
    D = cfg["head_dim"]

    # embed_tokens (gather — glue)
    h = jnp.take(params["embed"], input_ids, axis=0)             # (S, E) bf16

    # rotary cos/sin (mrope path)
    cos, sin = compute_mrope_cos_sin(mrope_position_ids, cfg["mrope_section"],
                                     D, cfg["rope_theta"], S)

    residual = None
    for p in params["layers"]:
        h, residual = decoder_layer_forward(h, residual, cos, sin, p, cfg)

    h, _ = add_rmsnorm(h, residual, params["norm_w"], cfg["rms_norm_eps"])
    return h


# ----------------------------------------------------------------------------
# deterministic parameter init
# ----------------------------------------------------------------------------
def init_params(key, cfg):
    E = cfg["hidden_size"]
    Hq = cfg["num_attention_heads"]
    Hkv = cfg["num_key_value_heads"]
    D = cfg["head_dim"]
    I = cfg["intermediate_size"]
    V = cfg["vocab_size"]
    qkv_out = (Hq + 2 * Hkv) * D

    keys = iter(jax.random.split(key, 8 * cfg["num_hidden_layers"] + 4))

    def w(shape, scale=0.02, dtype=jnp.bfloat16):
        return (scale * jax.random.normal(next(keys), shape, jnp.float32)).astype(dtype)

    params = {
        "embed": w((V, E)),
        "layers": [],
        "norm_w": jnp.ones((E,), jnp.bfloat16),
    }
    for _ in range(cfg["num_hidden_layers"]):
        params["layers"].append(dict(
            input_norm_w=jnp.ones((E,), jnp.bfloat16),
            post_norm_w=jnp.ones((E,), jnp.bfloat16),
            qkv_w=w((E, qkv_out)),
            qkv_b=w((qkv_out,), dtype=jnp.float32),
            o_w=w((Hq * D, E)),
            gate_w=w((E, I)),
            up_w=w((E, I)),
            down_w=w((I, E)),
        ))
    return params


# ----------------------------------------------------------------------------
if __name__ == "__main__":
    cfg = dict(
        vocab_size=128,
        hidden_size=256,
        num_attention_heads=4,
        num_key_value_heads=2,
        head_dim=64,
        intermediate_size=512,
        num_hidden_layers=2,
        rms_norm_eps=1e-6,
        rope_theta=1000000.0,
        mrope_section=[8, 12, 12],     # sums to head_dim // 2
    )
    seq = 16

    key = jax.random.PRNGKey(0)
    k_ids, k_par = jax.random.split(key)
    input_ids = jax.random.randint(k_ids, (seq,), 0, cfg["vocab_size"], jnp.int32)

    # mrope position ids: (temporal, height, width) streams
    t_pos = np.arange(seq, dtype=np.int32)
    h_pos = np.arange(seq, dtype=np.int32) // 4
    w_pos = np.arange(seq, dtype=np.int32) % 4
    mrope_position_ids = np.stack([t_pos, h_pos, w_pos], axis=0)   # (3, S)

    params = init_params(k_par, cfg)

    out = qwen2_model_forward(input_ids, mrope_position_ids, params, cfg)
    out = jax.block_until_ready(out)

    expected_shape = (seq, cfg["hidden_size"])
    assert out.shape == expected_shape, (out.shape, expected_shape)
    assert bool(jnp.all(jnp.isfinite(out.astype(jnp.float32))))
    print("KERNEL_OK")
</pallas_src>

<mosaic_0001>
module attributes {stable_mosaic.version = 11 : i64} {
  func.func @_rmsnorm_kernel(%arg0: i32, %arg1: memref<16x256xbf16, #tpu.memory_space<vmem>>, %arg2: memref<1x256xbf16, #tpu.memory_space<vmem>>, %arg3: memref<16x256xbf16, #tpu.memory_space<vmem>>) attributes {dimension_semantics = [#tpu.dimension_semantics<parallel>], iteration_bounds = array<i64: 1>, scalar_prefetch = 0 : i64, scratch_operands = 0 : i64, tpu.core_type = #tpu.core_type<tc>, window_params = [{transform_indices = @transform_0, window_bounds = array<i64: 16, 256>}, {pipeline_mode = #tpu.pipeline_mode<synchronous>, transform_indices = @transform_1, window_bounds = array<i64: 1, 256>}, {transform_indices = @transform_2, window_bounds = array<i64: 16, 256>}]} {
    %c0 = arith.constant 0 : index
    %c0_0 = arith.constant 0 : index
    %0 = vector.load %arg1[%c0, %c0_0] : memref<16x256xbf16, #tpu.memory_space<vmem>>, vector<16x256xbf16>
    %1 = arith.extf %0 : vector<16x256xbf16> to vector<16x256xf32>
    %2 = arith.mulf %1, %1 : vector<16x256xf32>
    %cst = arith.constant dense<0.000000e+00> : vector<16xf32>
    %3 = vector.multi_reduction <add>, %2, %cst [1] : vector<16x256xf32> to vector<16xf32>
    %4 = vector.shape_cast %3 : vector<16xf32> to vector<16x1xf32>
    %cst_1 = arith.constant 2.560000e+02 : f32
    %5 = vector.broadcast %cst_1 : f32 to vector<16x1xf32>
    %6 = arith.divf %4, %5 : vector<16x1xf32>
    %cst_2 = arith.constant 9.99999997E-7 : f32
    %7 = vector.broadcast %cst_2 : f32 to vector<16x1xf32>
    %8 = arith.addf %6, %7 : vector<16x1xf32>
    %9 = math.rsqrt %8 : vector<16x1xf32>
    %10 = vector.broadcast %9 : vector<16x1xf32> to vector<16x256xf32>
    %11 = arith.mulf %1, %10 : vector<16x256xf32>
    %c0_3 = arith.constant 0 : index
    %c0_4 = arith.constant 0 : index
    %12 = vector.load %arg2[%c0_3, %c0_4] : memref<1x256xbf16, #tpu.memory_space<vmem>>, vector<1x256xbf16>
    %13 = arith.extf %12 : vector<1x256xbf16> to vector<1x256xf32>
    %14 = vector.broadcast %13 : vector<1x256xf32> to vector<16x256xf32>
    %15 = arith.mulf %11, %14 : vector<16x256xf32>
    %16 = arith.truncf %15 : vector<16x256xf32> to vector<16x256xbf16>
    %c0_5 = arith.constant 0 : index
    %c0_6 = arith.constant 0 : index
    %17 = vector.load %arg3[%c0_5, %c0_6] : memref<16x256xbf16, #tpu.memory_space<vmem>>, vector<16x256xbf16>
    tpu.vector_store %arg3[%c0_5, %c0_6], %16 {strides = array<i32>} : memref<16x256xbf16, #tpu.memory_space<vmem>>, vector<16x256xbf16>,
    return
  }
  func.func @transform_0(%arg0: i32) -> (i32, i32) {
    %c0_i32 = arith.constant 0 : i32
    %c0_i32_0 = arith.constant 0 : i32
    return %arg0, %c0_i32 : i32, i32
  }
  func.func @transform_1(%arg0: i32) -> (i32, i32) {
    %c0_i32 = arith.constant 0 : i32
    %c0_i32_0 = arith.constant 0 : i32
    %c0_i32_1 = arith.constant 0 : i32
    return %c0_i32, %c0_i32_0 : i32, i32
  }
  func.func @transform_2(%arg0: i32) -> (i32, i32) {
    %c0_i32 = arith.constant 0 : i32
    %c0_i32_0 = arith.constant 0 : i32
    return %arg0, %c0_i32 : i32, i32
  }
}

</mosaic_0001>

<llo_original>
// kernel: tpu_custom_call.1
$region0: #{tpu_custom_call.1}
  #allocation0 [shape = 'u32[]', space=smem, size = 0x4, offset = 0x4, fixed_abs, tag = 'smem constant byte address 0x4 - core index']
  #allocation1 [shape = 'u32[144,128]{1,0:T(1,128)}', space=vmem, size = 0x12000, scoped, tag = 'internal scratch']
  %s0 = inlined_call_operand.hbm [shape: bf16[16,256], index: 0, kind: input, shape index: {}]
  %s1 = inlined_call_operand.hbm [shape: bf16[1,256], index: 1, kind: input, shape index: {}]
  %s2 = inlined_call_operand.hbm [shape: bf16[16,256], index: 2, kind: output, shape index: {}]
  %s3 = sld [smem:[#allocation0]]
  $region26: #{tpu_custom_call.1} parent=0
    _
  %s5 = ssub.s32 1, %s3
  %s6 = scalar_select 0, %s5, %s3
  $region1: #{tpu_custom_call.1} parent=0
    #allocation2 [shape = 'u8[8192]{0}', space=vmem, size = 0x2000, scoped, tag = 'input window, operand 0, single buffered']
    #allocation3 [shape = 's32[1]{0}', space=sflag, size = 0x4, scoped, tag = 'scoped memory for tpu_custom_call.1']
    #allocation4 [shape = 's32[1]{0}', space=sflag, size = 0x4, scoped, tag = 'scoped memory for tpu_custom_call.1']
    #allocation5 [shape = 'u8[1024]{0}', space=vmem, size = 0x400, scoped, tag = 'input window, operand 1, single buffered']
    #allocation6 [shape = 's32[1]{0}', space=sflag, size = 0x4, scoped, tag = 'scoped memory for tpu_custom_call.1']
    #allocation7 [shape = 'u8[8192]{0}', space=vmem, size = 0x2000, scoped, tag = 'output window, operand 0, single buffered']
    %7 = vsyncpa [#allocation3], 0
    %8 = vsyncpa [#allocation6], 0
    %9 = vsyncpa [#allocation4], 0
    // Predicated region
    $region2: #{tpu_custom_call.1} parent=1 // pred_check
      _
    $region3: #{tpu_custom_call.1} parent=1 // pred_check_branch
      %11 = sbr.rel (0) target = $region5
    $region4: #{tpu_custom_call.1} parent=1 // pred_region
      %s13 = ssub.s32 256, 256
      %14 = vsyncadd [#allocation3], %s13
      %s15 = sshll.u32 [#allocation2], 4
      %s16 = int_to_ptr.vmem [resolvable:$true] %s15
      %21 = dma.hbm_to_vmem [thread:$0]  %s0, 256, %s16, [#allocation3], 128, 128, 8
    $region5: #{tpu_custom_call.1} parent=1 // pred_fallthru
      _
    // Predicated region
    $region6: #{tpu_custom_call.1} parent=1 // pred_check
      _
    $region7: #{tpu_custom_call.1} parent=1 // pred_check_branch
      %23 = sbr.rel (0) target = $region9
    $region8: #{tpu_custom_call.1} parent=1 // pred_region
      %s25 = ssub.s32 32, 32
      %26 = vsyncadd [#allocation6], %s25
      %s28 = sshll.u32 [#allocation5], 4
      %s29 = int_to_ptr.vmem [resolvable:$true] %s28
      %31 = dma.hbm_to_vmem [thread:$0]  %s1, 32, %s29, [#allocation6]
    $region9: #{tpu_custom_call.1} parent=1 // pred_fallthru
      _
    // Predicated region
    $region10: #{tpu_custom_call.1} parent=1 // pred_check
      _
    $region11: #{tpu_custom_call.1} parent=1 // pred_check_branch
      %33 = sbr.rel (0) target = $region13
    $region12: #{tpu_custom_call.1} parent=1 // pred_region
      %34 = dma.done [#allocation3], 256
    $region13: #{tpu_custom_call.1} parent=1 // pred_fallthru
      _
    // Predicated region
    $region14: #{tpu_custom_call.1} parent=1 // pred_check
      _
    $region15: #{tpu_custom_call.1} parent=1 // pred_check_branch
      %36 = sbr.rel (0) target = $region17
    $region16: #{tpu_custom_call.1} parent=1 // pred_region
      %37 = dma.done [#allocation6], 32
    $region17: #{tpu_custom_call.1} parent=1 // pred_fallthru
      _
    %v38 = vld [vmem:[#allocation2] sm:$0xff]
    %v39 = vld [vmem:[#allocation2 + $0x8] sm:$0xff]
    %v40 = vunpack.c.l.bf16 %v38
    %v41 = vunpack.c.h.bf16 %v38
    %v42 = vunpack.c.l.bf16 %v39
    %v43 = vunpack.c.h.bf16 %v39
    %v44 = vmul.f32 %v40, %v40
    %v45 = vmul.f32 %v41, %v41
    %v46 = vmul.f32 %v42, %v42
    %v47 = vmul.f32 %v43, %v43
    %v48 = vadd.f32 %v44, %v45
    %49 = vadd.xlane.f32.xlu0 %v48
    %v50 = vpop.xlane.xlu0 %49
    %v51 = vadd.f32 %v46, %v47
    %52 = vadd.xlane.f32.xlu0 %v51
    %v53 = vpop.xlane.xlu0 %52
    %v54 = vrcp.pop 256.0
    %v55 = vmul.f32 %v50, %v54
    %v56 = vmul.f32 %v53, %v54
    %v57 = vadd.f32 %v55, 1e-06
    %v58 = vadd.f32 %v56, 1e-06
    %v59 = vrsqrt.pop %v57
    %v60 = vrsqrt.pop %v58
    %v61 = vmul.f32 %v40, %v59
    %v62 = vmul.f32 %v41, %v59
    %v63 = vmul.f32 %v42, %v60
    %v64 = vmul.f32 %v43, %v60
    %v65 = vld [vmem:[#allocation5] sm:$0x3]
    %v66 = vunpack.c.l.bf16 %v65
    %v68 = vlaneseq
    %v69 = vshrl.u32 %v68, 7
    %v70 = vsub.s32 0, %v69
    %v71 = vrot.slane %v66, %v70
    %v72 = vlaneseq
    %v73 = vshrl.u32 %v72, 7
    %v74 = vsub.s32 2, %v73
    %v75 = vrot.slane %v66, %v74
    %v78 = vlaneseq
    %v79 = vshrl.u32 %v78, 7
    %v80 = vsub.s32 0, %v79
    %v81 = vrot.slane %v71, %v80
    %v82 = vlaneseq
    %v83 = vshrl.u32 %v82, 7
    %v84 = vsub.s32 0, %v83
    %v85 = vrot.slane %v75, %v84
    %v86 = vmul.f32 %v61, %v81
    %v87 = vmul.f32 %v62, %v85
    %v88 = vmul.f32 %v63, %v81
    %v89 = vmul.f32 %v64, %v85
    %v90 = vpack.c.bf16 %v88, %v86
    %v91 = vpack.c.bf16 %v89, %v87
    %v94 = vunpack.c.l.b16 %v90
    %v95 = vunpack.c.l.b16 %v91
    %v96 = vunpack.c.h.b16 %v90
    %v97 = vunpack.c.h.b16 %v91
    %v98 = vpack.c.b16 %v95, %v94
    %v99 = vpack.c.b16 %v97, %v96
    %102 = vst [vmem:[#allocation7] sm:$0xff] %v98
    %103 = vst [vmem:[#allocation7 + $0x8] sm:$0xff] %v99
    // Predicated region
    $region18: #{tpu_custom_call.1} parent=1 // pred_check
      _
    $region19: #{tpu_custom_call.1} parent=1 // pred_check_branch
      %105 = sbr.rel (0) target = $region21
    $region20: #{tpu_custom_call.1} parent=1 // pred_region
      %s107 = ssub.s32 256, 256
      %108 = vsyncadd [#allocation4], %s107
      %s109 = sshll.u32 [#allocation7], 4
      %s110 = int_to_ptr.vmem [resolvable:$true] %s109
      %115 = dma.vmem_to_hbm [thread:$0]  %s110, 256, %s2, [#allocation4], 128, 128, 8
    $region21: #{tpu_custom_call.1} parent=1 // pred_fallthru
      _
    // Predicated region
    $region22: #{tpu_custom_call.1} parent=1 // pred_check
      _
    $region23: #{tpu_custom_call.1} parent=1 // pred_check_branch
      %117 = sbr.rel (0) target = $region25
    $region24: #{tpu_custom_call.1} parent=1 // pred_region
      %118 = dma.done [#allocation4], 256
    $region25: #{tpu_custom_call.1} parent=1 // pred_fallthru
      _
    %119 = vsyncpa [#allocation3], 1
    %120 = vsyncpa [#allocation6], 1
    %121 = vsyncpa [#allocation4], 1

</llo_original>
